<compile_context>
chip_gen: v7x
topology: tpu7x:2x2x1
jax: 0.10.0
libtpu: 0.0.40
codegen_flags: <defaults>
</compile_context>

<pallas_src>
import functools

import jax
import jax.numpy as jnp
from jax import lax
from jax.experimental import pallas as pl
from jax.experimental.pallas import tpu as pltpu


def _cdiv(a: int, b: int) -> int:
    return -(-a // b)


def _tpu_generation() -> int:
    try:
        kind = jax.devices()[0].device_kind.lower()
    except Exception:
        return 0
    if "v7" in kind or "tpu7" in kind:
        return 7
    if "v6" in kind:
        return 6
    if "v5" in kind:
        return 5
    return 0


def _kernel_config():
    gen = _tpu_generation()
    if gen == 7:
        # 64 MiB VMEM per TC: keep blocks modest, leave temp headroom, and use
        # both TensorCores via a leading "parallel" axis.
        return dict(tile_bytes=4 * 1024 * 1024,
                    vmem_limit=40 * 1024 * 1024,
                    core_splits=2)
    if gen in (5, 6):
        # 128 MiB VMEM, single TensorCore: bigger blocks amortize the ~0.35 us
        # per-grid-step overhead; no core split (it would be a serial loop).
        return dict(tile_bytes=8 * 1024 * 1024,
                    vmem_limit=96 * 1024 * 1024,
                    core_splits=1)
    # Unknown generation: conservative settings that fit any TPU's defaults.
    return dict(tile_bytes=1 * 1024 * 1024, vmem_limit=None, core_splits=1)


def _entropy_kernel(x_ref, o_ref, *, n_rows: int, tm: int, total_tiles: int,
                    tiles_per_core: int, n_splits: int, exact_eps: bool):
    """One (tm, C) row tile: stable softmax entropy, reduced to a scalar and
    accumulated into the resident per-core output block."""
    ci = pl.program_id(0)            # core-split axis ("parallel")
    ti = pl.program_id(1)            # row-tile reduction axis ("arbitrary")
    logical_tile = ci * tiles_per_core + ti

    @pl.when(ti == 0)
    def _():
        o_ref[...] = jnp.zeros_like(o_ref)

    def tile_entropy():
        x = x_ref[...].astype(jnp.float32)                       # (tm, C)
        m = jnp.max(x, axis=-1, keepdims=True)                   # (tm, 1)
        e = jnp.exp(x - m)                                       # (tm, C) EUP
        denom = jnp.sum(e, axis=-1, keepdims=True)               # (tm, 1)
        if exact_eps:
            # Exact PyTorch semantics (p never materialized):
            #   sum_j -p_j*log(p_j + eps)
            #     = log(denom) - (1/denom) * sum_j e_j*log(e_j + eps*denom)
            t = jnp.sum(e * jnp.log(e + 1e-5 * denom), axis=-1, keepdims=True)
        else:
            # Fast path (drops the +1e-5 inside the log): Shannon entropy
            #   log(denom) - (1/denom) * sum_j e_j*(x_j - m)
            # -> one transcendental per element instead of two.
            t = jnp.sum(e * (x - m), axis=-1, keepdims=True)
        return jnp.log(denom) - t / denom                        # (tm, 1)

    # Rows that are valid in the final row tile (compile-time constant).
    last_rows = n_rows - (total_tiles - 1) * tm

    def accumulate():
        ent = tile_entropy()
        if last_rows == tm:
            # No ragged tail: every tile accumulates unmasked.
            o_ref[...] += jnp.sum(ent)
        else:
            @pl.when(logical_tile < total_tiles - 1)
            def _():                                  # interior tiles: no mask work
                o_ref[...] += jnp.sum(ent)

            @pl.when(logical_tile == total_tiles - 1)
            def _():                                  # ragged last tile only
                row_ids = lax.broadcasted_iota(jnp.int32, ent.shape, 0)
                o_ref[...] += jnp.sum(jnp.where(row_ids < last_rows, ent, 0.0))

    if n_splits * tiles_per_core > total_tiles:
        # Clamped duplicate tiles exist (only on the multi-core split path):
        # skip their exp/log body entirely; they contribute nothing.
        @pl.when(logical_tile < total_tiles)
        def _():
            accumulate()
    else:
        accumulate()


def entropy_loss(logits: jax.Array, *, exact_eps: bool = True) -> jax.Array:
    """JAX/Pallas equivalent of the PyTorch entropy_loss.forward."""
    logits = jnp.asarray(logits)
    n, c = logits.shape
    if n == 0:
        # PyTorch branch: size == 0 -> loss = 0.0
        return jnp.float32(0.0)

    cfg = _kernel_config()

    # ---- Row-tile size: biggest multiple of 8 under the per-buffer budget. ----
    if n < 8:
        tm = n                                                   # full-extent block
    else:
        budget_rows = max(8, (cfg["tile_bytes"] // (c * 4)) // 8 * 8)
        tm = int(min(budget_rows, (n // 8) * 8))
    total_tiles = _cdiv(n, tm)

    # Core split only helps on multi-TensorCore parts (v7x); elsewhere the grid
    # is a serial loop and the split is pure overhead.
    n_splits = int(min(cfg["core_splits"], total_tiles))
    tiles_per_core = _cdiv(total_tiles, n_splits)

    if n_splits * tiles_per_core > total_tiles:
        # Clamp so every issued DMA stays in bounds; the duplicated logical
        # tiles are skipped inside the kernel.
        def x_index_map(ci, ti):
            return (jnp.minimum(ci * tiles_per_core + ti, total_tiles - 1), 0)
    else:
        def x_index_map(ci, ti):
            return (ci * tiles_per_core + ti, 0)

    kernel = functools.partial(
        _entropy_kernel,
        n_rows=n, tm=tm, total_tiles=total_tiles,
        tiles_per_core=tiles_per_core, n_splits=n_splits, exact_eps=exact_eps)

    # TODO(synk): small-C (< 128) lane-dense repacking and a C-tiled
    # online-softmax variant for huge vocabularies are not implemented here.
    # TODO(synk): verify plain "parallel" actually shards the leading axis
    # across both v7x TensorCores; switch to core-parallel semantics if not.
    partials = pl.pallas_call(
        kernel,
        out_shape=jax.ShapeDtypeStruct((n_splits, 8, 128), jnp.float32),
        grid_spec=pltpu.PrefetchScalarGridSpec(
            num_scalar_prefetch=0,
            grid=(n_splits, tiles_per_core),
            in_specs=[pl.BlockSpec((tm, c), x_index_map)],
            out_specs=pl.BlockSpec((1, 8, 128), lambda ci, ti: (ci, 0, 0)),
        ),
        compiler_params=pltpu.CompilerParams(
            dimension_semantics=("parallel", "arbitrary"),
            vmem_limit_bytes=cfg["vmem_limit"],
        ),
    )(logits)

    return jnp.sum(partials[:, 0, 0]) / jnp.float32(n)


def _reference(logits: jax.Array) -> jax.Array:
    p = jax.nn.softmax(logits.astype(jnp.float32), axis=-1)
    loss = jnp.sum(-p * jnp.log(p + 1e-5), axis=1)
    return jnp.mean(loss)


if __name__ == "__main__":
    key = jax.random.PRNGKey(0)

    # Small shape consistent with the module's forward: (batch, num_classes).
    logits = jax.random.normal(key, (16, 32), dtype=jnp.float32)
    out = jax.block_until_ready(entropy_loss(logits))
    ref = _reference(logits)
    assert jnp.allclose(out, ref, atol=1e-5, rtol=1e-5), (out, ref)

    # Ragged batch (exercises the gated mask on the partial last tile).
    logits2 = jax.random.normal(jax.random.PRNGKey(1), (20, 32), dtype=jnp.float32)
    out2 = jax.block_until_ready(entropy_loss(logits2))
    ref2 = _reference(logits2)
    assert jnp.allclose(out2, ref2, atol=1e-5, rtol=1e-5), (out2, ref2)

    # Fast EUP path (drops the +1e-5 inside the log): looser tolerance ~C*1e-5.
    out_fast = jax.block_until_ready(entropy_loss(logits, exact_eps=False))
    assert jnp.allclose(out_fast, ref, atol=5e-3), (out_fast, ref)

    print("KERNEL_OK")
</pallas_src>

<mosaic_0001>
module attributes {stable_mosaic.version = 11 : i64} {
  func.func @_entropy_kernel(%arg0: i32, %arg1: i32, %arg2: memref<16x32xf32, #tpu.memory_space<vmem>>, %arg3: memref<1x8x128xf32, #tpu.memory_space<vmem>>) attributes {dimension_semantics = [#tpu.dimension_semantics<parallel>, #tpu.dimension_semantics<arbitrary>], iteration_bounds = array<i64: 1, 1>, scalar_prefetch = 0 : i64, scratch_operands = 0 : i64, tpu.core_type = #tpu.core_type<tc>, window_params = [{transform_indices = @transform_0, window_bounds = array<i64: 16, 32>}, {transform_indices = @transform_1, window_bounds = array<i64: 1, 8, 128>}]} {
    %c0_i32 = arith.constant 0 : i32
    %0 = arith.cmpi eq, %arg1, %c0_i32 : i32
    %1 = arith.extui %0 : i1 to i32
    %c0_i32_0 = arith.constant 0 : i32
    %2 = arith.cmpi ne, %1, %c0_i32_0 : i32
    scf.if %2 {
      %cst_12 = arith.constant 0.000000e+00 : f32
      %30 = vector.broadcast %cst_12 : f32 to vector<1x8x128xf32>
      %c0_13 = arith.constant 0 : index
      %c0_14 = arith.constant 0 : index
      %c0_15 = arith.constant 0 : index
      %31 = vector.load %arg3[%c0_13, %c0_14, %c0_15] : memref<1x8x128xf32, #tpu.memory_space<vmem>>, vector<1x8x128xf32>
      tpu.vector_store %arg3[%c0_13, %c0_14, %c0_15], %30 {strides = array<i32>} : memref<1x8x128xf32, #tpu.memory_space<vmem>>, vector<1x8x128xf32>,
    } else {
    }
    %c0 = arith.constant 0 : index
    %c0_1 = arith.constant 0 : index
    %3 = vector.load %arg2[%c0, %c0_1] : memref<16x32xf32, #tpu.memory_space<vmem>>, vector<16x32xf32>
    %cst = arith.constant dense<0xFF800000> : vector<16xf32>
    %4 = vector.multi_reduction <maximumf>, %3, %cst [1] : vector<16x32xf32> to vector<16xf32>
    %5 = vector.shape_cast %4 : vector<16xf32> to vector<16x1xf32>
    %6 = vector.broadcast %5 : vector<16x1xf32> to vector<16x32xf32>
    %7 = arith.subf %3, %6 : vector<16x32xf32>
    %8 = math.exp %7 : vector<16x32xf32>
    %cst_2 = arith.constant dense<0.000000e+00> : vector<16xf32>
    %9 = vector.multi_reduction <add>, %8, %cst_2 [1] : vector<16x32xf32> to vector<16xf32>
    %10 = vector.shape_cast %9 : vector<16xf32> to vector<16x1xf32>
    %cst_3 = arith.constant 9.99999974E-6 : f32
    %11 = vector.broadcast %cst_3 : f32 to vector<16x1xf32>
    %12 = arith.mulf %11, %10 : vector<16x1xf32>
    %13 = vector.broadcast %12 : vector<16x1xf32> to vector<16x32xf32>
    %14 = arith.addf %8, %13 : vector<16x32xf32>
    %15 = math.log %14 : vector<16x32xf32>
    %16 = arith.mulf %8, %15 : vector<16x32xf32>
    %cst_4 = arith.constant dense<0.000000e+00> : vector<16xf32>
    %17 = vector.multi_reduction <add>, %16, %cst_4 [1] : vector<16x32xf32> to vector<16xf32>
    %18 = vector.shape_cast %17 : vector<16xf32> to vector<16x1xf32>
    %19 = math.log %10 : vector<16x1xf32>
    %20 = arith.divf %18, %10 : vector<16x1xf32>
    %21 = arith.subf %19, %20 : vector<16x1xf32>
    %c0_5 = arith.constant 0 : index
    %c0_6 = arith.constant 0 : index
    %c0_7 = arith.constant 0 : index
    %22 = vector.load %arg3[%c0_5, %c0_6, %c0_7] : memref<1x8x128xf32, #tpu.memory_space<vmem>>, vector<1x8x128xf32>
    %23 = vector.shape_cast %21 : vector<16x1xf32> to vector<1x16x1xf32>
    %cst_8 = arith.constant dense<0.000000e+00> : vector<1xf32>
    %24 = vector.multi_reduction <add>, %23, %cst_8 [1, 2] : vector<1x16x1xf32> to vector<1xf32>
    %25 = vector.shape_cast %24 : vector<1xf32> to vector<1x1x1xf32>
    %26 = vector.extract %25[0, 0, 0] : f32 from vector<1x1x1xf32>
    %27 = vector.broadcast %26 : f32 to vector<1x8x128xf32>
    %28 = arith.addf %22, %27 : vector<1x8x128xf32>
    %c0_9 = arith.constant 0 : index
    %c0_10 = arith.constant 0 : index
    %c0_11 = arith.constant 0 : index
    %29 = vector.load %arg3[%c0_9, %c0_10, %c0_11] : memref<1x8x128xf32, #tpu.memory_space<vmem>>, vector<1x8x128xf32>
    tpu.vector_store %arg3[%c0_9, %c0_10, %c0_11], %28 {strides = array<i32>} : memref<1x8x128xf32, #tpu.memory_space<vmem>>, vector<1x8x128xf32>,
    return
  }
  func.func @transform_0(%arg0: i32, %arg1: i32) -> (i32, i32) {
    %c1_i32 = arith.constant 1 : i32
    %0 = arith.muli %arg0, %c1_i32 : i32
    %1 = arith.addi %0, %arg1 : i32
    %c0_i32 = arith.constant 0 : i32
    %c0_i32_0 = arith.constant 0 : i32
    return %1, %c0_i32 : i32, i32
  }
  func.func @transform_1(%arg0: i32, %arg1: i32) -> (i32, i32, i32) {
    %c0_i32 = arith.constant 0 : i32
    %c0_i32_0 = arith.constant 0 : i32
    %c0_i32_1 = arith.constant 0 : i32
    return %arg0, %c0_i32, %c0_i32_0 : i32, i32, i32
  }
}

</mosaic_0001>

<llo_original>
// kernel: tpu_custom_call.1
$region0: #{tpu_custom_call.1}
  #allocation0 [shape = 'u32[]', space=smem, size = 0x4, offset = 0x4, fixed_abs, tag = 'smem constant byte address 0x4 - core index']
  #allocation1 [shape = 'u32[144,128]{1,0:T(1,128)}', space=vmem, size = 0x12000, scoped, tag = 'internal scratch']
  %s0 = inlined_call_operand.hbm [shape: f32[16,32], index: 0, kind: input, shape index: {}]
  %s1 = inlined_call_operand.hbm [shape: f32[1,8,128], index: 1, kind: output, shape index: {}]
  %s2 = sld [smem:[#allocation0]]
  $region22: #{tpu_custom_call.1} parent=0
    _
  %s4 = ssub.s32 1, %s2
  %s5 = scalar_select 0, %s4, %s2
  $region1: #{tpu_custom_call.1} parent=0
    #allocation2 [shape = 'u8[8192]{0}', space=vmem, size = 0x2000, scoped, tag = 'input window, operand 0, single buffered']
    #allocation3 [shape = 's32[1]{0}', space=sflag, size = 0x4, scoped, tag = 'scoped memory for tpu_custom_call.1']
    #allocation4 [shape = 's32[1]{0}', space=sflag, size = 0x4, scoped, tag = 'scoped memory for tpu_custom_call.1']
    #allocation5 [shape = 'u8[4096]{0}', space=vmem, size = 0x1000, scoped, tag = 'output window, operand 0, single buffered']
    %6 = vsyncpa [#allocation3], 0
    %7 = vsyncpa [#allocation4], 0
    // Predicated region
    $region2: #{tpu_custom_call.1} parent=1 // pred_check
      _
    $region3: #{tpu_custom_call.1} parent=1 // pred_check_branch
      %9 = sbr.rel (0) target = $region5
    $region4: #{tpu_custom_call.1} parent=1 // pred_region
      %s10 = sadd.s32 0, 0
      %s11 = smul.u32 2, %s10
      %s13 = ssub.s32 256, 256
      %14 = vsyncadd [#allocation3], %s13
      %s15 = smul.addr %s11, 128
      %s16 = scalar_lea.hbm %s0, %s15
      %s17 = sshll.u32 [#allocation2], 4
      %s18 = int_to_ptr.vmem [resolvable:$true] %s17
      %23 = dma.hbm_to_vmem [thread:$0]  %s16, 256, %s18, [#allocation3], 128, 128, 8
    $region5: #{tpu_custom_call.1} parent=1 // pred_fallthru
      _
    // Predicated region
    $region6: #{tpu_custom_call.1} parent=1 // pred_check
      _
    $region7: #{tpu_custom_call.1} parent=1 // pred_check_branch
      %25 = sbr.rel (0) target = $region9
    $region8: #{tpu_custom_call.1} parent=1 // pred_region
      %26 = dma.done [#allocation3], 256
    $region9: #{tpu_custom_call.1} parent=1 // pred_fallthru
      _
    %s27 = sadd.s32 0, 0
    %s28 = smul.u32 2, %s27
    %p29 = scmp.eq.s32.totalorder 0, 0
    // Predicated region
    $region10: #{tpu_custom_call.1} parent=1 // pred_check
      %p30 = pneg %p29
    $region11: #{tpu_custom_call.1} parent=1 // pred_check_branch
      %32 = sbr.rel (%p30) target = $region13
    $region12: #{tpu_custom_call.1} parent=1 // pred_region
      %33 = vst [vmem:[#allocation5] sm:$0xff] 0.0
    $region13: #{tpu_custom_call.1} parent=1 // pred_fallthru
      _
    %v34 = vld [vmem:[#allocation2] sm:$0xff]
    %v35 = vld [vmem:[#allocation2 + $0x8] sm:$0xff]
    %vm36 = vcmask 261120
    %v37 = vsel %vm36, %v34, -inf
    %38 = vmax.xlane.f32.xlu0 %v37
    %v39 = vpop.xlane.xlu0 %38
    %v40 = vsel %vm36, %v35, -inf
    %41 = vmax.xlane.f32.xlu0 %v40
    %v42 = vpop.xlane.xlu0 %41
    %v43 = vsub.f32 %v34, %v39
    %v44 = vsub.f32 %v35, %v42
    %v45 = vmul.f32 %v43, 1.442695
    %v46 = vpow.pop %v45
    %v47 = vmul.f32 %v44, 1.442695
    %v48 = vpow.pop %v47
    %v49 = vsel %vm36, %v46, 0.0
    %50 = vadd.xlane.f32.xlu0 %v49
    %v51 = vpop.xlane.xlu0 %50
    %v52 = vsel %vm36, %v48, 0.0
    %53 = vadd.xlane.f32.xlu0 %v52
    %v54 = vpop.xlane.xlu0 %53
    %v55 = vmul.f32 %v51, 1e-05
    %v56 = vmul.f32 %v54, 1e-05
    %v57 = vadd.f32 %v46, %v55
    %v58 = vadd.f32 %v48, %v56
    %v59 = vlog2.pop %v57
    %v60 = vmul.f32 %v59, 0.6931472
    %v61 = vlog2.pop %v58
    %v62 = vmul.f32 %v61, 0.6931472
    %v63 = vmul.f32 %v46, %v60
    %v64 = vmul.f32 %v48, %v62
    %v65 = vsel %vm36, %v63, 0.0
    %66 = vadd.xlane.f32.xlu0 %v65
    %v67 = vpop.xlane.xlu0 %66
    %v68 = vsel %vm36, %v64, 0.0
    %69 = vadd.xlane.f32.xlu0 %v68
    %v70 = vpop.xlane.xlu0 %69
    %v71 = vlog2.pop %v51
    %v72 = vmul.f32 %v71, 0.6931472
    %v73 = vlog2.pop %v54
    %v74 = vmul.f32 %v73, 0.6931472
    %v75 = vrcp.pop %v51
    %v76 = vmul.f32 %v67, %v75
    %v77 = vrcp.pop %v54
    %v78 = vmul.f32 %v70, %v77
    %v79 = vsub.f32 %v72, %v76
    %v80 = vsub.f32 %v74, %v78
    %v81 = vld [vmem:[#allocation5] sm:$0xff]
    %vm82 = vcmask 7168
    %v83 = vsel %vm82, %v79, 0.0
    %v84 = vsel %vm82, %v80, 0.0
    %v85 = vadd.f32 %v83, %v84
    %86 = vadd.xlane.f32.xlu0 %v85
    %v87 = vpop.xlane.xlu0 %86
    %v88 = vrot.slane %v87, 4
    %v89 = vadd.f32 %v87, %v88
    %v90 = vrot.slane %v89, 2
    %v91 = vadd.f32 %v89, %v90
    %v92 = vrot.slane %v91, 1
    %v93 = vadd.f32 %v91, %v92
    %s94 = vtos %v93
    %v95 = vstv %s94
    %v96 = vadd.f32 %v81, %v95
    %97 = vst [vmem:[#allocation5] sm:$0xff] %v96
    // Predicated region
    $region14: #{tpu_custom_call.1} parent=1 // pred_check
      _
    $region15: #{tpu_custom_call.1} parent=1 // pred_check_branch
      %99 = sbr.rel (0) target = $region17
    $region16: #{tpu_custom_call.1} parent=1 // pred_region
      %s101 = ssub.s32 128, 128
      %102 = vsyncadd [#allocation4], %s101
      %s104 = sshll.u32 [#allocation5], 4
      %s105 = int_to_ptr.vmem [resolvable:$true] %s104
      %107 = dma.vmem_to_hbm [thread:$0]  %s105, 128, %s1, [#allocation4]
    $region17: #{tpu_custom_call.1} parent=1 // pred_fallthru
      _
    // Predicated region
    $region18: #{tpu_custom_call.1} parent=1 // pred_check
      _
    $region19: #{tpu_custom_call.1} parent=1 // pred_check_branch
      %109 = sbr.rel (0) target = $region21
    $region20: #{tpu_custom_call.1} parent=1 // pred_region
      %110 = dma.done [#allocation4], 128
    $region21: #{tpu_custom_call.1} parent=1 // pred_fallthru
      _
    %111 = vsyncpa [#allocation3], 1
    %112 = vsyncpa [#allocation4], 1

</llo_original>
